<compile_context>
chip_gen: v7x
topology: tpu7x:2x2x1
jax: 0.10.0
libtpu: 0.0.40
codegen_flags: <defaults>
</compile_context>

<pallas_src>
import jax
import jax.numpy as jnp
from jax.experimental import pallas as pl
from jax.experimental.pallas import tpu as pltpu


# ----------------------------- parameter packing -----------------------------

def _round_up(x, m):
    return -(-x // m) * m


def _pack_params(params):
    """Pack W1..W6 (transposed to [out,in]) and b6 (as a column) into one f32 buffer.

    Each segment starts on an 8-row (sublane) boundary; the buffer is max_in (=L0=32)
    lanes wide.  Biases b1..b5 are intentionally dropped (exactly cancelled by the
    following training-mode BatchNorm).  Returns (packed, seg_info, b6_info) where
    seg_info[i] = (row0, out_rows, in_cols) and b6_info = (row0, rows).
    """
    max_w = max(int(w.shape[0]) for w, _ in params)     # max in-dim (= L0)
    segs, seg_info, row = [], [], 0
    for w, _ in params:
        wt = jnp.asarray(w, jnp.float32).T               # [out, in]
        r, c = int(wt.shape[0]), int(wt.shape[1])
        r_pad = _round_up(r, 8)
        seg = jnp.zeros((r_pad, max_w), jnp.float32).at[:r, :c].set(wt)
        segs.append(seg)
        seg_info.append((row, r, c))
        row += r_pad
    # b6 stored as a column so it broadcasts over the lane (batch) axis in-kernel.
    b6 = jnp.asarray(params[-1][1], jnp.float32).reshape(-1)   # [L0]
    r = int(b6.shape[0])
    r_pad = _round_up(r, 8)
    segs.append(jnp.zeros((r_pad, max_w), jnp.float32).at[:r, 0].set(b6))
    b6_info = (row, r)
    packed = jnp.concatenate(segs, axis=0)               # [152, 32] for [32,24,16,8]
    return packed, tuple(seg_info), b6_info


# ----------------------------- Pallas kernel --------------------------------

def _make_dae_kernel(seg_info, b6_info):
    b6_row, b6_rows = b6_info
    eps = 1e-5
    slope = 0.01

    def kernel(xt_ref, p_ref, out_ref, latent_ref):
        # All activations are feature-major: [features (sublanes), batch (lanes)].

        def w(i):
            r0, r, c = seg_info[i]
            return p_ref[r0:r0 + r, 0:c]                 # [out, in] static slice

        def dense(h, i):
            # W[out,in] @ h[in,N] -> [out,N].  f32 MXU matmul (bf16 cast would cut
            # MXU passes 2-3x but breaks the 1e-4 parity tolerance; K<=32 anyway).
            return jnp.dot(w(i), h, preferred_element_type=jnp.float32)

        def bn(h):
            # Training-mode BatchNorm1d (gamma=1, beta=0, biased batch variance) over
            # the batch (lane) axis.  One fused-stats pass + one normalize pass:
            # h is traversed exactly twice.
            mu = jnp.mean(h, axis=1, keepdims=True)       # [F, 1]
            ex2 = jnp.mean(h * h, axis=1, keepdims=True)  # [F, 1]
            var = jnp.maximum(ex2 - mu * mu, 0.0)
            scale = jax.lax.rsqrt(var + eps)              # [F, 1]
            shift = -mu * scale
            return h * scale + shift                      # single lane-dense sweep

        def lrelu(h):
            return jnp.maximum(h, slope * h)

        def sigmoid(h):
            return 0.5 * jnp.tanh(0.5 * h) + 0.5          # single EUP transcendental

        x = xt_ref[...]                                   # [L0, N]

        # ---- encoder ----
        h = lrelu(bn(dense(x, 0)))                        # EncoderBase    L0 -> L1
        h = lrelu(bn(dense(h, 1)))                        # EncoderReLU    L1 -> L2
        latent = sigmoid(bn(dense(h, 2)))                 # EncoderSigmoid L2 -> L3
        latent_ref[...] = latent.astype(latent_ref.dtype)

        # ---- decoder ----
        h = lrelu(bn(dense(latent, 3)))                   # DecoderReLU    L3 -> L2
        h = lrelu(bn(dense(h, 4)))                        # DecoderReLU    L2 -> L1
        # DecoderBase: BN result is discarded in the PyTorch source -> BN skipped,
        # so its bias does NOT cancel and must be applied (per-feature column).
        b6 = p_ref[b6_row:b6_row + b6_rows, 0:1]          # [L0, 1]
        out = sigmoid(dense(h, 5) + b6)                   # DecoderBase    L1 -> L0
        out_ref[...] = out.astype(out_ref.dtype)

    return kernel


def deep_autoencoder_forward(x, params):
    """x: [N, L0] float32. params: list of 6 (W[in,out], b[1,out]) tuples.

    Full-batch BatchNorm requires the whole batch in one invocation, so this is a
    grid-less call with everything resident in VMEM (tiny model; activations are
    ~N*(L0+2*L1+2*L2+2*L3)*4 B).  Batch lives on the lane axis inside the kernel —
    pass N as a multiple of 128 for fully lane-dense compute and stores (any N is
    still correct).  Callers that want maximum throughput for large N can consume the
    transposed outputs directly instead of the final XLA transposes below.
    """
    n, l0 = x.shape
    l3 = int(params[2][0].shape[1])
    packed, seg_info, b6_info = _pack_params(params)
    kernel = _make_dae_kernel(seg_info, b6_info)

    xt = jnp.asarray(x, jnp.float32).T                    # [L0, N]

    # Resident VMEM estimate: input + both outputs + all intermediates + params,
    # with 2x headroom for buffering/scratch. Clamp well under v7x's 64 MiB physical.
    feat_dims = [int(w.shape[1]) for w, _ in params]      # 24,16,8,16,24,32
    act_bytes = 4 * n * (l0 + sum(feat_dims) + l3)
    param_bytes = 4 * int(packed.size)
    vmem_limit = int(min(max(2 * (act_bytes + param_bytes) + (2 << 20), 4 << 20),
                         60 << 20))

    flops = 2 * n * sum(int(w.shape[0]) * int(w.shape[1]) for w, _ in params)
    transcendentals = n * (l0 + l3)                       # two sigmoids (rsqrt is per-feature)
    bytes_accessed = 4 * n * (2 * l0 + l3) + param_bytes

    out_t, latent_t = pl.pallas_call(
        kernel,
        out_shape=(jax.ShapeDtypeStruct((l0, n), jnp.float32),   # reconstruction^T
                   jax.ShapeDtypeStruct((l3, n), jnp.float32)),  # latent^T
        # No grid: 2 inputs (x^T, packed params), each a single full-array VMEM block.
        in_specs=[pl.BlockSpec(memory_space=pltpu.MemorySpace.VMEM)] * 2,
        out_specs=(pl.BlockSpec(memory_space=pltpu.MemorySpace.VMEM),
                   pl.BlockSpec(memory_space=pltpu.MemorySpace.VMEM)),
        compiler_params=pltpu.CompilerParams(vmem_limit_bytes=vmem_limit),
        cost_estimate=pl.CostEstimate(flops=flops,
                                      transcendentals=transcendentals,
                                      bytes_accessed=bytes_accessed),
    )(xt, packed)

    return out_t.T, latent_t.T                            # back to [N, L0] / [N, L3]


# ------------------------- deterministic param init -------------------------

def _kaiming_uniform(key, fan_in, fan_out, a=0.01):
    gain = jnp.sqrt(2.0 / (1.0 + a * a))
    bound = gain * jnp.sqrt(3.0 / fan_in)
    return jax.random.uniform(key, (fan_in, fan_out), jnp.float32, -bound, bound)


def _xavier_uniform(key, fan_in, fan_out):
    bound = jnp.sqrt(6.0 / (fan_in + fan_out))
    return jax.random.uniform(key, (fan_in, fan_out), jnp.float32, -bound, bound)


def _linear_bias(key, fan_in, fan_out):
    bound = 1.0 / jnp.sqrt(fan_in)
    return jax.random.uniform(key, (1, fan_out), jnp.float32, -bound, bound)


def build_params(key, layers):
    """6 linear layers implied by DeepAutoEncoder.pretrain for a 4-entry `layers`
    list.  BN affine params are gamma=1/beta=0 at init (identity) and folded out."""
    l0, l1, l2, l3 = layers
    keys = jax.random.split(key, 12)
    return [
        (_kaiming_uniform(keys[0], l0, l1), _linear_bias(keys[1], l0, l1)),   # EncoderBase
        (_kaiming_uniform(keys[2], l1, l2), _linear_bias(keys[3], l1, l2)),   # EncoderReLU
        (_xavier_uniform(keys[4], l2, l3), _linear_bias(keys[5], l2, l3)),    # EncoderSigmoid
        (_kaiming_uniform(keys[6], l3, l2), _linear_bias(keys[7], l3, l2)),   # DecoderReLU
        (_kaiming_uniform(keys[8], l2, l1), _linear_bias(keys[9], l2, l1)),   # DecoderReLU
        (_xavier_uniform(keys[10], l1, l0), _linear_bias(keys[11], l1, l0)),  # DecoderBase
    ]


# ------------------------------ pure-JAX reference ---------------------------

def _reference_forward(x, params):
    """Faithful to PyTorch semantics: biases applied everywhere, two-pass BN stats,
    exact sigmoid, batch-major layout.  The kernel drops b1..b5 (BN cancels them) and
    computes transposed — this reference verifies those claims numerically."""
    def bn(h):
        mu = jnp.mean(h, axis=0, keepdims=True)
        var = jnp.mean((h - mu) ** 2, axis=0, keepdims=True)
        return (h - mu) / jnp.sqrt(var + 1e-5)

    def lrelu(h):
        return jnp.where(h >= 0, h, 0.01 * h)

    (w1, b1), (w2, b2), (w3, b3), (w4, b4), (w5, b5), (w6, b6) = params
    h = lrelu(bn(x @ w1 + b1))
    h = lrelu(bn(h @ w2 + b2))
    latent = jax.nn.sigmoid(bn(h @ w3 + b3))
    h = lrelu(bn(latent @ w4 + b4))
    h = lrelu(bn(h @ w5 + b5))
    out = jax.nn.sigmoid(h @ w6 + b6)   # BN skipped (DecoderBase bug reproduced)
    return out, latent


# ----------------------------------- main ------------------------------------

if __name__ == "__main__":
    layers = [32, 24, 16, 8]   # L0, L1, L2, L3
    batch = 128                # small, and a multiple of 128 -> fully lane-dense layout
                               # (the wrapper accepts any N; the module trains with 16)

    key = jax.random.PRNGKey(0)
    k_x, k_p = jax.random.split(key)
    x = jax.random.normal(k_x, (batch, layers[0]), dtype=jnp.float32)
    params = build_params(k_p, layers)

    out, latent = deep_autoencoder_forward(x, params)
    out, latent = jax.block_until_ready((out, latent))

    ref_out, ref_latent = _reference_forward(x, params)
    assert out.shape == (batch, layers[0]) and latent.shape == (batch, layers[-1])
    # Tolerance covers the exact-but-reassociated forms used in-kernel (bias
    # cancellation, one-pass variance, scale/shift normalize, tanh-form sigmoid,
    # transposed matmuls): rounding-level differences only.
    assert jnp.allclose(out, ref_out, atol=1e-4, rtol=1e-4)
    assert jnp.allclose(latent, ref_latent, atol=1e-4, rtol=1e-4)

    print("KERNEL_OK")
</pallas_src>

<mosaic_0001>
module attributes {stable_mosaic.version = 11 : i64} {
  func.func @kernel(%arg0: memref<32x128xf32, #tpu.memory_space<vmem>>, %arg1: memref<152x32xf32, #tpu.memory_space<vmem>>, %arg2: memref<32x128xf32, #tpu.memory_space<vmem>>, %arg3: memref<8x128xf32, #tpu.memory_space<vmem>>) attributes {dimension_semantics = [], scalar_prefetch = 0 : i64, scratch_operands = 0 : i64, tpu.core_type = #tpu.core_type<tc>} {
    %c0 = arith.constant 0 : index
    %c0_0 = arith.constant 0 : index
    %0 = vector.load %arg0[%c0, %c0_0] : memref<32x128xf32, #tpu.memory_space<vmem>>, vector<32x128xf32>
    %c0_1 = arith.constant 0 : index
    %c0_2 = arith.constant 0 : index
    %1 = vector.load %arg1[%c0_1, %c0_2] : memref<152x32xf32, #tpu.memory_space<vmem>>, vector<24x32xf32>
    %cst = arith.constant dense<0.000000e+00> : vector<24x128xf32>
    %2 = tpu.matmul %1, %0, %cst {dimension_numbers = #tpu.dot_dimension_numbers<[1], [0], [0], [1], [0, 0, 1, 1], [], []>} : vector<24x32xf32>, vector<32x128xf32>, vector<24x128xf32> -> vector<24x128xf32>
    %cst_3 = arith.constant dense<0.000000e+00> : vector<24xf32>
    %3 = vector.multi_reduction <add>, %2, %cst_3 [1] : vector<24x128xf32> to vector<24xf32>
    %4 = vector.shape_cast %3 : vector<24xf32> to vector<24x1xf32>
    %cst_4 = arith.constant 1.280000e+02 : f32
    %5 = vector.broadcast %cst_4 : f32 to vector<24x1xf32>
    %6 = arith.divf %4, %5 : vector<24x1xf32>
    %7 = arith.mulf %2, %2 : vector<24x128xf32>
    %cst_5 = arith.constant dense<0.000000e+00> : vector<24xf32>
    %8 = vector.multi_reduction <add>, %7, %cst_5 [1] : vector<24x128xf32> to vector<24xf32>
    %9 = vector.shape_cast %8 : vector<24xf32> to vector<24x1xf32>
    %cst_6 = arith.constant 1.280000e+02 : f32
    %10 = vector.broadcast %cst_6 : f32 to vector<24x1xf32>
    %11 = arith.divf %9, %10 : vector<24x1xf32>
    %12 = arith.mulf %6, %6 : vector<24x1xf32>
    %13 = arith.subf %11, %12 : vector<24x1xf32>
    %cst_7 = arith.constant 0.000000e+00 : f32
    %14 = vector.broadcast %cst_7 : f32 to vector<24x1xf32>
    %15 = arith.maximumf %13, %14 : vector<24x1xf32>
    %cst_8 = arith.constant 9.99999974E-6 : f32
    %16 = vector.broadcast %cst_8 : f32 to vector<24x1xf32>
    %17 = arith.addf %15, %16 : vector<24x1xf32>
    %18 = math.rsqrt %17 : vector<24x1xf32>
    %cst_9 = arith.constant 0.000000e+00 : f32
    %19 = vector.broadcast %cst_9 : f32 to vector<24x1xf32>
    %20 = arith.subf %19, %6 : vector<24x1xf32>
    %21 = arith.mulf %20, %18 : vector<24x1xf32>
    %22 = vector.broadcast %18 : vector<24x1xf32> to vector<24x128xf32>
    %23 = arith.mulf %2, %22 : vector<24x128xf32>
    %24 = vector.broadcast %21 : vector<24x1xf32> to vector<24x128xf32>
    %25 = arith.addf %23, %24 : vector<24x128xf32>
    %cst_10 = arith.constant 0.00999999977 : f32
    %26 = vector.broadcast %cst_10 : f32 to vector<24x128xf32>
    %27 = arith.mulf %26, %25 : vector<24x128xf32>
    %28 = arith.maximumf %25, %27 : vector<24x128xf32>
    %c24 = arith.constant 24 : index
    %c0_11 = arith.constant 0 : index
    %29 = vector.load %arg1[%c24, %c0_11] : memref<152x32xf32, #tpu.memory_space<vmem>>, vector<16x24xf32>
    %cst_12 = arith.constant dense<0.000000e+00> : vector<16x128xf32>
    %30 = tpu.matmul %29, %28, %cst_12 {dimension_numbers = #tpu.dot_dimension_numbers<[1], [0], [0], [1], [0, 0, 1, 1], [], []>} : vector<16x24xf32>, vector<24x128xf32>, vector<16x128xf32> -> vector<16x128xf32>
    %cst_13 = arith.constant dense<0.000000e+00> : vector<16xf32>
    %31 = vector.multi_reduction <add>, %30, %cst_13 [1] : vector<16x128xf32> to vector<16xf32>
    %32 = vector.shape_cast %31 : vector<16xf32> to vector<16x1xf32>
    %cst_14 = arith.constant 1.280000e+02 : f32
    %33 = vector.broadcast %cst_14 : f32 to vector<16x1xf32>
    %34 = arith.divf %32, %33 : vector<16x1xf32>
    %35 = arith.mulf %30, %30 : vector<16x128xf32>
    %cst_15 = arith.constant dense<0.000000e+00> : vector<16xf32>
    %36 = vector.multi_reduction <add>, %35, %cst_15 [1] : vector<16x128xf32> to vector<16xf32>
    %37 = vector.shape_cast %36 : vector<16xf32> to vector<16x1xf32>
    %cst_16 = arith.constant 1.280000e+02 : f32
    %38 = vector.broadcast %cst_16 : f32 to vector<16x1xf32>
    %39 = arith.divf %37, %38 : vector<16x1xf32>
    %40 = arith.mulf %34, %34 : vector<16x1xf32>
    %41 = arith.subf %39, %40 : vector<16x1xf32>
    %cst_17 = arith.constant 0.000000e+00 : f32
    %42 = vector.broadcast %cst_17 : f32 to vector<16x1xf32>
    %43 = arith.maximumf %41, %42 : vector<16x1xf32>
    %cst_18 = arith.constant 9.99999974E-6 : f32
    %44 = vector.broadcast %cst_18 : f32 to vector<16x1xf32>
    %45 = arith.addf %43, %44 : vector<16x1xf32>
    %46 = math.rsqrt %45 : vector<16x1xf32>
    %cst_19 = arith.constant 0.000000e+00 : f32
    %47 = vector.broadcast %cst_19 : f32 to vector<16x1xf32>
    %48 = arith.subf %47, %34 : vector<16x1xf32>
    %49 = arith.mulf %48, %46 : vector<16x1xf32>
    %50 = vector.broadcast %46 : vector<16x1xf32> to vector<16x128xf32>
    %51 = arith.mulf %30, %50 : vector<16x128xf32>
    %52 = vector.broadcast %49 : vector<16x1xf32> to vector<16x128xf32>
    %53 = arith.addf %51, %52 : vector<16x128xf32>
    %cst_20 = arith.constant 0.00999999977 : f32
    %54 = vector.broadcast %cst_20 : f32 to vector<16x128xf32>
    %55 = arith.mulf %54, %53 : vector<16x128xf32>
    %56 = arith.maximumf %53, %55 : vector<16x128xf32>
    %c40 = arith.constant 40 : index
    %c0_21 = arith.constant 0 : index
    %57 = vector.load %arg1[%c40, %c0_21] : memref<152x32xf32, #tpu.memory_space<vmem>>, vector<8x16xf32>
    %cst_22 = arith.constant dense<0.000000e+00> : vector<8x128xf32>
    %58 = tpu.matmul %57, %56, %cst_22 {dimension_numbers = #tpu.dot_dimension_numbers<[1], [0], [0], [1], [0, 0, 1, 1], [], []>} : vector<8x16xf32>, vector<16x128xf32>, vector<8x128xf32> -> vector<8x128xf32>
    %cst_23 = arith.constant dense<0.000000e+00> : vector<8xf32>
    %59 = vector.multi_reduction <add>, %58, %cst_23 [1] : vector<8x128xf32> to vector<8xf32>
    %60 = vector.shape_cast %59 : vector<8xf32> to vector<8x1xf32>
    %cst_24 = arith.constant 1.280000e+02 : f32
    %61 = vector.broadcast %cst_24 : f32 to vector<8x1xf32>
    %62 = arith.divf %60, %61 : vector<8x1xf32>
    %63 = arith.mulf %58, %58 : vector<8x128xf32>
    %cst_25 = arith.constant dense<0.000000e+00> : vector<8xf32>
    %64 = vector.multi_reduction <add>, %63, %cst_25 [1] : vector<8x128xf32> to vector<8xf32>
    %65 = vector.shape_cast %64 : vector<8xf32> to vector<8x1xf32>
    %cst_26 = arith.constant 1.280000e+02 : f32
    %66 = vector.broadcast %cst_26 : f32 to vector<8x1xf32>
    %67 = arith.divf %65, %66 : vector<8x1xf32>
    %68 = arith.mulf %62, %62 : vector<8x1xf32>
    %69 = arith.subf %67, %68 : vector<8x1xf32>
    %cst_27 = arith.constant 0.000000e+00 : f32
    %70 = vector.broadcast %cst_27 : f32 to vector<8x1xf32>
    %71 = arith.maximumf %69, %70 : vector<8x1xf32>
    %cst_28 = arith.constant 9.99999974E-6 : f32
    %72 = vector.broadcast %cst_28 : f32 to vector<8x1xf32>
    %73 = arith.addf %71, %72 : vector<8x1xf32>
    %74 = math.rsqrt %73 : vector<8x1xf32>
    %cst_29 = arith.constant 0.000000e+00 : f32
    %75 = vector.broadcast %cst_29 : f32 to vector<8x1xf32>
    %76 = arith.subf %75, %62 : vector<8x1xf32>
    %77 = arith.mulf %76, %74 : vector<8x1xf32>
    %78 = vector.broadcast %74 : vector<8x1xf32> to vector<8x128xf32>
    %79 = arith.mulf %58, %78 : vector<8x128xf32>
    %80 = vector.broadcast %77 : vector<8x1xf32> to vector<8x128xf32>
    %81 = arith.addf %79, %80 : vector<8x128xf32>
    %cst_30 = arith.constant 5.000000e-01 : f32
    %82 = vector.broadcast %cst_30 : f32 to vector<8x128xf32>
    %83 = arith.mulf %82, %81 : vector<8x128xf32>
    %84 = math.tanh %83 : vector<8x128xf32>
    %cst_31 = arith.constant 5.000000e-01 : f32
    %85 = vector.broadcast %cst_31 : f32 to vector<8x128xf32>
    %86 = arith.mulf %85, %84 : vector<8x128xf32>
    %cst_32 = arith.constant 5.000000e-01 : f32
    %87 = vector.broadcast %cst_32 : f32 to vector<8x128xf32>
    %88 = arith.addf %86, %87 : vector<8x128xf32>
    %c0_33 = arith.constant 0 : index
    %c0_34 = arith.constant 0 : index
    %89 = vector.load %arg3[%c0_33, %c0_34] : memref<8x128xf32, #tpu.memory_space<vmem>>, vector<8x128xf32>
    tpu.vector_store %arg3[%c0_33, %c0_34], %88 {strides = array<i32>} : memref<8x128xf32, #tpu.memory_space<vmem>>, vector<8x128xf32>,
    %c48 = arith.constant 48 : index
    %c0_35 = arith.constant 0 : index
    %90 = vector.load %arg1[%c48, %c0_35] : memref<152x32xf32, #tpu.memory_space<vmem>>, vector<16x8xf32>
    %cst_36 = arith.constant dense<0.000000e+00> : vector<16x128xf32>
    %91 = tpu.matmul %90, %88, %cst_36 {dimension_numbers = #tpu.dot_dimension_numbers<[1], [0], [0], [1], [0, 0, 1, 1], [], []>} : vector<16x8xf32>, vector<8x128xf32>, vector<16x128xf32> -> vector<16x128xf32>
    %cst_37 = arith.constant dense<0.000000e+00> : vector<16xf32>
    %92 = vector.multi_reduction <add>, %91, %cst_37 [1] : vector<16x128xf32> to vector<16xf32>
    %93 = vector.shape_cast %92 : vector<16xf32> to vector<16x1xf32>
    %cst_38 = arith.constant 1.280000e+02 : f32
    %94 = vector.broadcast %cst_38 : f32 to vector<16x1xf32>
    %95 = arith.divf %93, %94 : vector<16x1xf32>
    %96 = arith.mulf %91, %91 : vector<16x128xf32>
    %cst_39 = arith.constant dense<0.000000e+00> : vector<16xf32>
    %97 = vector.multi_reduction <add>, %96, %cst_39 [1] : vector<16x128xf32> to vector<16xf32>
    %98 = vector.shape_cast %97 : vector<16xf32> to vector<16x1xf32>
    %cst_40 = arith.constant 1.280000e+02 : f32
    %99 = vector.broadcast %cst_40 : f32 to vector<16x1xf32>
    %100 = arith.divf %98, %99 : vector<16x1xf32>
    %101 = arith.mulf %95, %95 : vector<16x1xf32>
    %102 = arith.subf %100, %101 : vector<16x1xf32>
    %cst_41 = arith.constant 0.000000e+00 : f32
    %103 = vector.broadcast %cst_41 : f32 to vector<16x1xf32>
    %104 = arith.maximumf %102, %103 : vector<16x1xf32>
    %cst_42 = arith.constant 9.99999974E-6 : f32
    %105 = vector.broadcast %cst_42 : f32 to vector<16x1xf32>
    %106 = arith.addf %104, %105 : vector<16x1xf32>
    %107 = math.rsqrt %106 : vector<16x1xf32>
    %cst_43 = arith.constant 0.000000e+00 : f32
    %108 = vector.broadcast %cst_43 : f32 to vector<16x1xf32>
    %109 = arith.subf %108, %95 : vector<16x1xf32>
    %110 = arith.mulf %109, %107 : vector<16x1xf32>
    %111 = vector.broadcast %107 : vector<16x1xf32> to vector<16x128xf32>
    %112 = arith.mulf %91, %111 : vector<16x128xf32>
    %113 = vector.broadcast %110 : vector<16x1xf32> to vector<16x128xf32>
    %114 = arith.addf %112, %113 : vector<16x128xf32>
    %cst_44 = arith.constant 0.00999999977 : f32
    %115 = vector.broadcast %cst_44 : f32 to vector<16x128xf32>
    %116 = arith.mulf %115, %114 : vector<16x128xf32>
    %117 = arith.maximumf %114, %116 : vector<16x128xf32>
    %c64 = arith.constant 64 : index
    %c0_45 = arith.constant 0 : index
    %118 = vector.load %arg1[%c64, %c0_45] : memref<152x32xf32, #tpu.memory_space<vmem>>, vector<24x16xf32>
    %cst_46 = arith.constant dense<0.000000e+00> : vector<24x128xf32>
    %119 = tpu.matmul %118, %117, %cst_46 {dimension_numbers = #tpu.dot_dimension_numbers<[1], [0], [0], [1], [0, 0, 1, 1], [], []>} : vector<24x16xf32>, vector<16x128xf32>, vector<24x128xf32> -> vector<24x128xf32>
    %cst_47 = arith.constant dense<0.000000e+00> : vector<24xf32>
    %120 = vector.multi_reduction <add>, %119, %cst_47 [1] : vector<24x128xf32> to vector<24xf32>
    %121 = vector.shape_cast %120 : vector<24xf32> to vector<24x1xf32>
    %cst_48 = arith.constant 1.280000e+02 : f32
    %122 = vector.broadcast %cst_48 : f32 to vector<24x1xf32>
    %123 = arith.divf %121, %122 : vector<24x1xf32>
    %124 = arith.mulf %119, %119 : vector<24x128xf32>
    %cst_49 = arith.constant dense<0.000000e+00> : vector<24xf32>
    %125 = vector.multi_reduction <add>, %124, %cst_49 [1] : vector<24x128xf32> to vector<24xf32>
    %126 = vector.shape_cast %125 : vector<24xf32> to vector<24x1xf32>
    %cst_50 = arith.constant 1.280000e+02 : f32
    %127 = vector.broadcast %cst_50 : f32 to vector<24x1xf32>
    %128 = arith.divf %126, %127 : vector<24x1xf32>
    %129 = arith.mulf %123, %123 : vector<24x1xf32>
    %130 = arith.subf %128, %129 : vector<24x1xf32>
    %cst_51 = arith.constant 0.000000e+00 : f32
    %131 = vector.broadcast %cst_51 : f32 to vector<24x1xf32>
    %132 = arith.maximumf %130, %131 : vector<24x1xf32>
    %cst_52 = arith.constant 9.99999974E-6 : f32
    %133 = vector.broadcast %cst_52 : f32 to vector<24x1xf32>
    %134 = arith.addf %132, %133 : vector<24x1xf32>
    %135 = math.rsqrt %134 : vector<24x1xf32>
    %cst_53 = arith.constant 0.000000e+00 : f32
    %136 = vector.broadcast %cst_53 : f32 to vector<24x1xf32>
    %137 = arith.subf %136, %123 : vector<24x1xf32>
    %138 = arith.mulf %137, %135 : vector<24x1xf32>
    %139 = vector.broadcast %135 : vector<24x1xf32> to vector<24x128xf32>
    %140 = arith.mulf %119, %139 : vector<24x128xf32>
    %141 = vector.broadcast %138 : vector<24x1xf32> to vector<24x128xf32>
    %142 = arith.addf %140, %141 : vector<24x128xf32>
    %cst_54 = arith.constant 0.00999999977 : f32
    %143 = vector.broadcast %cst_54 : f32 to vector<24x128xf32>
    %144 = arith.mulf %143, %142 : vector<24x128xf32>
    %145 = arith.maximumf %142, %144 : vector<24x128xf32>
    %c120 = arith.constant 120 : index
    %c0_55 = arith.constant 0 : index
    %146 = vector.load %arg1[%c120, %c0_55] : memref<152x32xf32, #tpu.memory_space<vmem>>, vector<32x1xf32>
    %c88 = arith.constant 88 : index
    %c0_56 = arith.constant 0 : index
    %147 = vector.load %arg1[%c88, %c0_56] : memref<152x32xf32, #tpu.memory_space<vmem>>, vector<32x24xf32>
    %cst_57 = arith.constant dense<0.000000e+00> : vector<32x128xf32>
    %148 = tpu.matmul %147, %145, %cst_57 {dimension_numbers = #tpu.dot_dimension_numbers<[1], [0], [0], [1], [0, 0, 1, 1], [], []>} : vector<32x24xf32>, vector<24x128xf32>, vector<32x128xf32> -> vector<32x128xf32>
    %149 = vector.broadcast %146 : vector<32x1xf32> to vector<32x128xf32>
    %150 = arith.addf %148, %149 : vector<32x128xf32>
    %cst_58 = arith.constant 5.000000e-01 : f32
    %151 = vector.broadcast %cst_58 : f32 to vector<32x128xf32>
    %152 = arith.mulf %151, %150 : vector<32x128xf32>
    %153 = math.tanh %152 : vector<32x128xf32>
    %cst_59 = arith.constant 5.000000e-01 : f32
    %154 = vector.broadcast %cst_59 : f32 to vector<32x128xf32>
    %155 = arith.mulf %154, %153 : vector<32x128xf32>
    %cst_60 = arith.constant 5.000000e-01 : f32
    %156 = vector.broadcast %cst_60 : f32 to vector<32x128xf32>
    %157 = arith.addf %155, %156 : vector<32x128xf32>
    %c0_61 = arith.constant 0 : index
    %c0_62 = arith.constant 0 : index
    %158 = vector.load %arg2[%c0_61, %c0_62] : memref<32x128xf32, #tpu.memory_space<vmem>>, vector<32x128xf32>
    tpu.vector_store %arg2[%c0_61, %c0_62], %157 {strides = array<i32>} : memref<32x128xf32, #tpu.memory_space<vmem>>, vector<32x128xf32>,
    return
  }
}

</mosaic_0001>

<llo_original>
// kernel: tpu_custom_call.1
$region0: #{tpu_custom_call.1}
  #allocation0 [shape = 'u32[]', space=smem, size = 0x4, offset = 0x4, fixed_abs, tag = 'smem constant byte address 0x4 - core index']
  #allocation1 [shape = 'u32[144,128]{1,0:T(1,128)}', space=vmem, size = 0x12000, scoped, tag = 'internal scratch']
  %s0 = inlined_call_operand.vmem [shape: f32[32,128], index: 0, kind: input, shape index: {}]
  %s1 = inlined_call_operand.vmem [shape: f32[152,32], index: 1, kind: input, shape index: {}]
  %s2 = inlined_call_operand.hbm [shape: f32[32,128], index: 2, kind: output, shape index: {0}]
  %s3 = inlined_call_operand.hbm [shape: f32[8,128], index: 3, kind: output, shape index: {1}]
  %4 = xla_tuple %s2, %s3
  %s5 = sld [smem:[#allocation0]]
  $region26: #{tpu_custom_call.1} parent=0
    _
  %s7 = ssub.s32 1, %s5
  %s8 = scalar_select 0, %s7, %s5
  $region1: #{tpu_custom_call.1} parent=0
    #allocation2 [shape = 'u8[16384]{0}', space=vmem, size = 0x4000, scoped, tag = 'output window, operand 0, single buffered']
    #allocation3 [shape = 's32[1]{0}', space=sflag, size = 0x4, scoped, tag = 'scoped memory for tpu_custom_call.1']
    #allocation4 [shape = 'u8[4096]{0}', space=vmem, size = 0x1000, scoped, tag = 'output window, operand 1, single buffered']
    #allocation5 [shape = 's32[1]{0}', space=sflag, size = 0x4, scoped, tag = 'scoped memory for tpu_custom_call.1']
    %9 = vsyncpa [#allocation3], 0
    %10 = vsyncpa [#allocation5], 0
    // Predicated region
    $region2: #{tpu_custom_call.1} parent=1 // pred_check
      _
    $region3: #{tpu_custom_call.1} parent=1 // pred_check_branch
      %12 = sbr.rel (0) target = $region5
    $region4: #{tpu_custom_call.1} parent=1 // pred_region
      _
    $region5: #{tpu_custom_call.1} parent=1 // pred_fallthru
      _
    // Predicated region
    $region6: #{tpu_custom_call.1} parent=1 // pred_check
      _
    $region7: #{tpu_custom_call.1} parent=1 // pred_check_branch
      %14 = sbr.rel (0) target = $region9
    $region8: #{tpu_custom_call.1} parent=1 // pred_region
      _
    $region9: #{tpu_custom_call.1} parent=1 // pred_fallthru
      _
    %v15 = vld [vmem:[%s0] sm:$0xff]
    %v16 = vld [vmem:[%s0 + $0x8] sm:$0xff]
    %v17 = vld [vmem:[%s0 + $0x10] sm:$0xff]
    %v18 = vld [vmem:[%s0 + $0x18] sm:$0xff]
    %v19 = vld [vmem:[%s1] sm:$0xff]
    %v20 = vld [vmem:[%s1 + $0x8] sm:$0xff]
    %v21 = vld [vmem:[%s1 + $0x10] sm:$0xff]
    %vm22 = vcmask 261120
    %v24 = vsel %vm22, %v19, 0
    %v27 = vsel %vm22, %v20, 0
    %v30 = vsel %vm22, %v21, 0
    %32 = vmatprep.subr.mxu0 0.0
    %33 = vmatpush1.msra.mxu0 %v15
    %34 = vmatprep.subr.mxu0 0.0
    %35 = vmatpush1.msra.mxu0 %v16
    %36 = vmatprep.subr.mxu0 0.0
    %37 = vmatpush1.msra.mxu0 %v17
    %38 = vmatprep.subr.mxu0 0.0
    %39 = vmatpush1.msra.mxu0 %v18
    %40 = vmatprep.subr.mxu0 0.0
    %41 = vmatpush1.msra.mxu0 0.0
    %42 = vmatprep.subr.mxu0 0.0
    %43 = vmatpush1.msra.mxu0 0.0
    %44 = vmatprep.subr.mxu0 0.0
    %45 = vmatpush1.msra.mxu0 0.0
    %46 = vmatprep.subr.mxu0 0.0
    %47 = vmatpush1.msra.mxu0 0.0
    %48 = vmatprep.subr.mxu0 0.0
    %49 = vmatpush1.msra.mxu0 0.0
    %50 = vmatprep.subr.mxu0 0.0
    %51 = vmatpush1.msra.mxu0 0.0
    %52 = vmatprep.subr.mxu0 0.0
    %53 = vmatpush1.msra.mxu0 0.0
    %54 = vmatprep.subr.mxu0 0.0
    %55 = vmatpush1.msra.mxu0 0.0
    %56 = vmatprep.subr.mxu0 0.0
    %57 = vmatpush1.msra.mxu0 0.0
    %58 = vmatprep.subr.mxu0 0.0
    %59 = vmatpush1.msra.mxu0 0.0
    %60 = vmatprep.subr.mxu0 0.0
    %61 = vmatpush1.msra.mxu0 0.0
    %62 = vmatprep.subr.mxu0 0.0
    %63 = vmatpush1.msra.mxu0 0.0
    %64 = vmatprep.subr.mxu0 0.0
    %65 = vmatpush1.msra.mxu0 0.0
    %66 = vmatprep.subr.mxu0 0.0
    %67 = vmatpush1.msra.mxu0 0.0
    %68 = vmatprep.subr.mxu0 0.0
    %69 = vmatpush1.msra.mxu0 0.0
    %70 = vmatprep.subr.mxu0 0.0
    %71 = vmatpush1.msra.mxu0 0.0
    %72 = vmatprep.subr.mxu0 0.0
    %73 = vmatpush1.msra.mxu0 0.0
    %74 = vmatprep.subr.mxu0 0.0
    %75 = vmatpush1.msra.mxu0 0.0
    %76 = vmatprep.subr.mxu0 0.0
    %77 = vmatpush1.msra.mxu0 0.0
    %78 = vmatprep.subr.mxu0 0.0
    %79 = vmatpush1.msra.mxu0 0.0
    %80 = vmatprep.subr.mxu0 0.0
    %81 = vmatpush1.msra.mxu0 0.0
    %82 = vmatprep.subr.mxu0 0.0
    %83 = vmatpush1.msra.mxu0 0.0
    %84 = vmatprep.subr.mxu0 0.0
    %85 = vmatpush1.msra.mxu0 0.0
    %86 = vmatprep.subr.mxu0 0.0
    %87 = vmatpush1.msra.mxu0 0.0
    %88 = vmatprep.subr.mxu0 0.0
    %89 = vmatpush1.msra.mxu0 0.0
    %90 = vmatprep.subr.mxu0 0.0
    %91 = vmatpush1.msra.mxu0 0.0
    %92 = vmatprep.subr.mxu0 0.0
    %93 = vmatpush1.msra.mxu0 0.0
    %94 = vmatprep.subr.mxu0 0.0
    %95 = vmatpush1.msra.mxu0 0.0
    %96 = vmatprep.mubr.f32.mxu0 0.0
    %97 = vmatmul.mubr.f32.gmra.mrb[0].mxu0 %v24
    %v98 = vpop.f32.mrb[0].mxu0
    %v99 = vadd.f32 0.0, %v98
    %v100 = vpop.f32.mrb[0].mxu0
    %101 = vmatprep.mubr.f32.mxu0 0.0
    %102 = vmatmul.mubr.f32.gmra.mrb[0].mxu0 %v27
    %v103 = vpop.f32.mrb[0].mxu0
    %v104 = vadd.f32 0.0, %v103
    %v105 = vpop.f32.mrb[0].mxu0
    %106 = vmatprep.mubr.f32.mxu0 0.0
    %107 = vmatmul.mubr.f32.gmra.mrb[0].mxu0 %v30
    %v108 = vpop.f32.mrb[0].mxu0
    %v109 = vadd.f32 0.0, %v108
    %v110 = vpop.f32.mrb[0].mxu0
    %111 = vdwg.mxu0
    %112 = vadd.xlane.f32.xlu0 %v99
    %v113 = vpop.xlane.xlu0 %112
    %114 = vadd.xlane.f32.xlu0 %v104
    %v115 = vpop.xlane.xlu0 %114
    %116 = vadd.xlane.f32.xlu0 %v109
    %v117 = vpop.xlane.xlu0 %116
    %v118 = vrcp.pop 128.0
    %v119 = vmul.f32 %v113, %v118
    %v120 = vmul.f32 %v115, %v118
    %v121 = vmul.f32 %v117, %v118
    %v122 = vmul.f32 %v99, %v99
    %v123 = vmul.f32 %v104, %v104
    %v124 = vmul.f32 %v109, %v109
    %125 = vadd.xlane.f32.xlu0 %v122
    %v126 = vpop.xlane.xlu0 %125
    %127 = vadd.xlane.f32.xlu0 %v123
    %v128 = vpop.xlane.xlu0 %127
    %129 = vadd.xlane.f32.xlu0 %v124
    %v130 = vpop.xlane.xlu0 %129
    %v131 = vmul.f32 %v126, %v118
    %v132 = vmul.f32 %v128, %v118
    %v133 = vmul.f32 %v130, %v118
    %v134 = vmul.f32 %v119, %v119
    %v135 = vmul.f32 %v120, %v120
    %v136 = vmul.f32 %v121, %v121
    %v137 = vsub.f32 %v131, %v134
    %v138 = vsub.f32 %v132, %v135
    %v139 = vsub.f32 %v133, %v136
    %v140 = vmax.f32 %v137, 0.0
    %v141 = vmax.f32 %v138, 0.0
    %v142 = vmax.f32 %v139, 0.0
    %v143 = vadd.f32 %v140, 1e-05
    %v144 = vadd.f32 %v141, 1e-05
    %v145 = vadd.f32 %v142, 1e-05
    %v146 = vrsqrt.pop %v143
    %v147 = vrsqrt.pop %v144
    %v148 = vrsqrt.pop %v145
    %v149 = vsub.f32 0.0, %v119
    %v150 = vsub.f32 0.0, %v120
    %v151 = vsub.f32 0.0, %v121
    %v152 = vmul.f32 %v149, %v146
    %v153 = vmul.f32 %v150, %v147
    %v154 = vmul.f32 %v151, %v148
    %v155 = vmul.f32 %v99, %v146
    %v156 = vmul.f32 %v104, %v147
    %v157 = vmul.f32 %v109, %v148
    %v158 = vadd.f32 %v155, %v152
    %v159 = vadd.f32 %v156, %v153
    %v160 = vadd.f32 %v157, %v154
    %v161 = vmul.f32 %v158, 0.01
    %v162 = vmul.f32 %v159, 0.01
    %v163 = vmul.f32 %v160, 0.01
    %v164 = vmax.f32 %v158, %v161
    %v165 = vmax.f32 %v159, %v162
    %v166 = vmax.f32 %v160, %v163
    %v167 = vld [vmem:[%s1 + $0x18] sm:$0xff]
    %v168 = vld [vmem:[%s1 + $0x20] sm:$0xff]
    %vm169 = vcmask 195584
    %v171 = vsel %vm169, %v167, 0
    %v174 = vsel %vm169, %v168, 0
    %176 = vmatprep.subr.mxu0 0.0
    %177 = vmatpush1.msra.mxu0 %v164
    %178 = vmatprep.subr.mxu0 0.0
    %179 = vmatpush1.msra.mxu0 %v165
    %180 = vmatprep.subr.mxu0 0.0
    %181 = vmatpush1.msra.mxu0 %v166
    %182 = vmatprep.subr.mxu0 0.0
    %183 = vmatpush1.msra.mxu0 0.0
    %184 = vmatprep.subr.mxu0 0.0
    %185 = vmatpush1.msra.mxu0 0.0
    %186 = vmatprep.subr.mxu0 0.0
    %187 = vmatpush1.msra.mxu0 0.0
    %188 = vmatprep.subr.mxu0 0.0
    %189 = vmatpush1.msra.mxu0 0.0
    %190 = vmatprep.subr.mxu0 0.0
    %191 = vmatpush1.msra.mxu0 0.0
    %192 = vmatprep.subr.mxu0 0.0
    %193 = vmatpush1.msra.mxu0 0.0
    %194 = vmatprep.subr.mxu0 0.0
    %195 = vmatpush1.msra.mxu0 0.0
    %196 = vmatprep.subr.mxu0 0.0
    %197 = vmatpush1.msra.mxu0 0.0
    %198 = vmatprep.subr.mxu0 0.0
    %199 = vmatpush1.msra.mxu0 0.0
    %200 = vmatprep.subr.mxu0 0.0
    %201 = vmatpush1.msra.mxu0 0.0
    %202 = vmatprep.subr.mxu0 0.0
    %203 = vmatpush1.msra.mxu0 0.0
    %204 = vmatprep.subr.mxu0 0.0
    %205 = vmatpush1.msra.mxu0 0.0
    %206 = vmatprep.subr.mxu0 0.0
    %207 = vmatpush1.msra.mxu0 0.0
    %208 = vmatprep.subr.mxu0 0.0
    %209 = vmatpush1.msra.mxu0 0.0
    %210 = vmatprep.subr.mxu0 0.0
    %211 = vmatpush1.msra.mxu0 0.0
    %212 = vmatprep.subr.mxu0 0.0
    %213 = vmatpush1.msra.mxu0 0.0
    %214 = vmatprep.subr.mxu0 0.0
    %215 = vmatpush1.msra.mxu0 0.0
    %216 = vmatprep.subr.mxu0 0.0
    %217 = vmatpush1.msra.mxu0 0.0
    %218 = vmatprep.subr.mxu0 0.0
    %219 = vmatpush1.msra.mxu0 0.0
    %220 = vmatprep.subr.mxu0 0.0
    %221 = vmatpush1.msra.mxu0 0.0
    %222 = vmatprep.subr.mxu0 0.0
    %223 = vmatpush1.msra.mxu0 0.0
    %224 = vmatprep.subr.mxu0 0.0
    %225 = vmatpush1.msra.mxu0 0.0
    %226 = vmatprep.subr.mxu0 0.0
    %227 = vmatpush1.msra.mxu0 0.0
    %228 = vmatprep.subr.mxu0 0.0
    %229 = vmatpush1.msra.mxu0 0.0
    %230 = vmatprep.subr.mxu0 0.0
    %231 = vmatpush1.msra.mxu0 0.0
    %232 = vmatprep.subr.mxu0 0.0
    %233 = vmatpush1.msra.mxu0 0.0
    %234 = vmatprep.subr.mxu0 0.0
    %235 = vmatpush1.msra.mxu0 0.0
    %236 = vmatprep.subr.mxu0 0.0
    %237 = vmatpush1.msra.mxu0 0.0
    %238 = vmatprep.subr.mxu0 0.0
    %239 = vmatpush1.msra.mxu0 0.0
    %240 = vmatprep.mubr.f32.mxu0 0.0
    %241 = vmatmul.mubr.f32.gmra.mrb[0].mxu0 %v171
    %v242 = vpop.f32.mrb[0].mxu0
    %v243 = vadd.f32 0.0, %v242
    %v244 = vpop.f32.mrb[0].mxu0
    %245 = vmatprep.mubr.f32.mxu0 0.0
    %246 = vmatmul.mubr.f32.gmra.mrb[0].mxu0 %v174
    %v247 = vpop.f32.mrb[0].mxu0
    %v248 = vadd.f32 0.0, %v247
    %v249 = vpop.f32.mrb[0].mxu0
    %250 = vdwg.mxu0
    %251 = vadd.xlane.f32.xlu0 %v243
    %v252 = vpop.xlane.xlu0 %251
    %253 = vadd.xlane.f32.xlu0 %v248
    %v254 = vpop.xlane.xlu0 %253
    %v255 = vmul.f32 %v252, %v118
    %v256 = vmul.f32 %v254, %v118
    %v257 = vmul.f32 %v243, %v243
    %v258 = vmul.f32 %v248, %v248
    %259 = vadd.xlane.f32.xlu0 %v257
    %v260 = vpop.xlane.xlu0 %259
    %261 = vadd.xlane.f32.xlu0 %v258
    %v262 = vpop.xlane.xlu0 %261
    %v263 = vmul.f32 %v260, %v118
    %v264 = vmul.f32 %v262, %v118
    %v265 = vmul.f32 %v255, %v255
    %v266 = vmul.f32 %v256, %v256
    %v267 = vsub.f32 %v263, %v265
    %v268 = vsub.f32 %v264, %v266
    %v269 = vmax.f32 %v267, 0.0
    %v270 = vmax.f32 %v268, 0.0
    %v271 = vadd.f32 %v269, 1e-05
    %v272 = vadd.f32 %v270, 1e-05
    %v273 = vrsqrt.pop %v271
    %v274 = vrsqrt.pop %v272
    %v275 = vsub.f32 0.0, %v255
    %v276 = vsub.f32 0.0, %v256
    %v277 = vmul.f32 %v275, %v273
    %v278 = vmul.f32 %v276, %v274
    %v279 = vmul.f32 %v243, %v273
    %v280 = vmul.f32 %v248, %v274
    %v281 = vadd.f32 %v279, %v277
    %v282 = vadd.f32 %v280, %v278
    %v283 = vmul.f32 %v281, 0.01
    %v284 = vmul.f32 %v282, 0.01
    %v285 = vmax.f32 %v281, %v283
    %v286 = vmax.f32 %v282, %v284
    %v287 = vld [vmem:[%s1 + $0x28] sm:$0xff]
    %vm288 = vcmask 130048
    %v290 = vsel %vm288, %v287, 0
    %292 = vmatprep.subr.mxu0 0.0
    %293 = vmatpush1.msra.mxu0 %v285
    %294 = vmatprep.subr.mxu0 0.0
    %295 = vmatpush1.msra.mxu0 %v286
    %296 = vmatprep.subr.mxu0 0.0
    %297 = vmatpush1.msra.mxu0 0.0
    %298 = vmatprep.subr.mxu0 0.0
    %299 = vmatpush1.msra.mxu0 0.0
    %300 = vmatprep.subr.mxu0 0.0
    %301 = vmatpush1.msra.mxu0 0.0
    %302 = vmatprep.subr.mxu0 0.0
    %303 = vmatpush1.msra.mxu0 0.0
    %304 = vmatprep.subr.mxu0 0.0
    %305 = vmatpush1.msra.mxu0 0.0
    %306 = vmatprep.subr.mxu0 0.0
    %307 = vmatpush1.msra.mxu0 0.0
    %308 = vmatprep.subr.mxu0 0.0
    %309 = vmatpush1.msra.mxu0 0.0
    %310 = vmatprep.subr.mxu0 0.0
    %311 = vmatpush1.msra.mxu0 0.0
    %312 = vmatprep.subr.mxu0 0.0
    %313 = vmatpush1.msra.mxu0 0.0
    %314 = vmatprep.subr.mxu0 0.0
    %315 = vmatpush1.msra.mxu0 0.0
    %316 = vmatprep.subr.mxu0 0.0
    %317 = vmatpush1.msra.mxu0 0.0
    %318 = vmatprep.subr.mxu0 0.0
    %319 = vmatpush1.msra.mxu0 0.0
    %320 = vmatprep.subr.mxu0 0.0
    %321 = vmatpush1.msra.mxu0 0.0
    %322 = vmatprep.subr.mxu0 0.0
    %323 = vmatpush1.msra.mxu0 0.0
    %324 = vmatprep.subr.mxu0 0.0
    %325 = vmatpush1.msra.mxu0 0.0
    %326 = vmatprep.subr.mxu0 0.0
    %327 = vmatpush1.msra.mxu0 0.0
    %328 = vmatprep.subr.mxu0 0.0
    %329 = vmatpush1.msra.mxu0 0.0
    %330 = vmatprep.subr.mxu0 0.0
    %331 = vmatpush1.msra.mxu0 0.0
    %332 = vmatprep.subr.mxu0 0.0
    %333 = vmatpush1.msra.mxu0 0.0
    %334 = vmatprep.subr.mxu0 0.0
    %335 = vmatpush1.msra.mxu0 0.0
    %336 = vmatprep.subr.mxu0 0.0
    %337 = vmatpush1.msra.mxu0 0.0
    %338 = vmatprep.subr.mxu0 0.0
    %339 = vmatpush1.msra.mxu0 0.0
    %340 = vmatprep.subr.mxu0 0.0
    %341 = vmatpush1.msra.mxu0 0.0
    %342 = vmatprep.subr.mxu0 0.0
    %343 = vmatpush1.msra.mxu0 0.0
    %344 = vmatprep.subr.mxu0 0.0
    %345 = vmatpush1.msra.mxu0 0.0
    %346 = vmatprep.subr.mxu0 0.0
    %347 = vmatpush1.msra.mxu0 0.0
    %348 = vmatprep.subr.mxu0 0.0
    %349 = vmatpush1.msra.mxu0 0.0
    %350 = vmatprep.subr.mxu0 0.0
    %351 = vmatpush1.msra.mxu0 0.0
    %352 = vmatprep.subr.mxu0 0.0
    %353 = vmatpush1.msra.mxu0 0.0
    %354 = vmatprep.subr.mxu0 0.0
    %355 = vmatpush1.msra.mxu0 0.0
    %356 = vmatprep.mubr.f32.mxu0 0.0
    %357 = vmatmul.mubr.f32.gmra.mrb[0].mxu0 %v290
    %v358 = vpop.f32.mrb[0].mxu0
    %v359 = vadd.f32 0.0, %v358
    %v360 = vpop.f32.mrb[0].mxu0
    %361 = vdwg.mxu0
    %362 = vadd.xlane.f32.xlu0 %v359
    %v363 = vpop.xlane.xlu0 %362
    %v364 = vmul.f32 %v363, %v118
    %v365 = vmul.f32 %v359, %v359
    %366 = vadd.xlane.f32.xlu0 %v365
    %v367 = vpop.xlane.xlu0 %366
    %v368 = vmul.f32 %v367, %v118
    %v369 = vmul.f32 %v364, %v364
    %v370 = vsub.f32 %v368, %v369
    %v371 = vmax.f32 %v370, 0.0
    %v372 = vadd.f32 %v371, 1e-05
    %v373 = vrsqrt.pop %v372
    %v374 = vsub.f32 0.0, %v364
    %v375 = vmul.f32 %v374, %v373
    %v376 = vmul.f32 %v359, %v373
    %v377 = vadd.f32 %v376, %v375
    %v378 = vmul.f32 %v377, 0.5
    %v379 = vtanh.pop %v378
    %v380 = vmul.f32 %v379, 0.5
    %v381 = vadd.f32 %v380, 0.5
    %382 = vst [vmem:[#allocation4] sm:$0xff] %v381
    %v383 = vld [vmem:[%s1 + $0x30] sm:$0xff]
    %v384 = vld [vmem:[%s1 + $0x38] sm:$0xff]
    %vm385 = vcmask 64512
    %v387 = vsel %vm385, %v383, 0
    %v390 = vsel %vm385, %v384, 0
    %392 = vmatprep.subr.mxu0 0.0
    %393 = vmatpush1.msra.mxu0 %v381
    %394 = vmatprep.subr.mxu0 0.0
    %395 = vmatpush1.msra.mxu0 0.0
    %396 = vmatprep.subr.mxu0 0.0
    %397 = vmatpush1.msra.mxu0 0.0
    %398 = vmatprep.subr.mxu0 0.0
    %399 = vmatpush1.msra.mxu0 0.0
    %400 = vmatprep.subr.mxu0 0.0
    %401 = vmatpush1.msra.mxu0 0.0
    %402 = vmatprep.subr.mxu0 0.0
    %403 = vmatpush1.msra.mxu0 0.0
    %404 = vmatprep.subr.mxu0 0.0
    %405 = vmatpush1.msra.mxu0 0.0
    %406 = vmatprep.subr.mxu0 0.0
    %407 = vmatpush1.msra.mxu0 0.0
    %408 = vmatprep.subr.mxu0 0.0
    %409 = vmatpush1.msra.mxu0 0.0
    %410 = vmatprep.subr.mxu0 0.0
    %411 = vmatpush1.msra.mxu0 0.0
    %412 = vmatprep.subr.mxu0 0.0
    %413 = vmatpush1.msra.mxu0 0.0
    %414 = vmatprep.subr.mxu0 0.0
    %415 = vmatpush1.msra.mxu0 0.0
    %416 = vmatprep.subr.mxu0 0.0
    %417 = vmatpush1.msra.mxu0 0.0
    %418 = vmatprep.subr.mxu0 0.0
    %419 = vmatpush1.msra.mxu0 0.0
    %420 = vmatprep.subr.mxu0 0.0
    %421 = vmatpush1.msra.mxu0 0.0
    %422 = vmatprep.subr.mxu0 0.0
    %423 = vmatpush1.msra.mxu0 0.0
    %424 = vmatprep.subr.mxu0 0.0
    %425 = vmatpush1.msra.mxu0 0.0
    %426 = vmatprep.subr.mxu0 0.0
    %427 = vmatpush1.msra.mxu0 0.0
    %428 = vmatprep.subr.mxu0 0.0
    %429 = vmatpush1.msra.mxu0 0.0
    %430 = vmatprep.subr.mxu0 0.0
    %431 = vmatpush1.msra.mxu0 0.0
    %432 = vmatprep.subr.mxu0 0.0
    %433 = vmatpush1.msra.mxu0 0.0
    %434 = vmatprep.subr.mxu0 0.0
    %435 = vmatpush1.msra.mxu0 0.0
    %436 = vmatprep.subr.mxu0 0.0
    %437 = vmatpush1.msra.mxu0 0.0
    %438 = vmatprep.subr.mxu0 0.0
    %439 = vmatpush1.msra.mxu0 0.0
    %440 = vmatprep.subr.mxu0 0.0
    %441 = vmatpush1.msra.mxu0 0.0
    %442 = vmatprep.subr.mxu0 0.0
    %443 = vmatpush1.msra.mxu0 0.0
    %444 = vmatprep.subr.mxu0 0.0
    %445 = vmatpush1.msra.mxu0 0.0
    %446 = vmatprep.subr.mxu0 0.0
    %447 = vmatpush1.msra.mxu0 0.0
    %448 = vmatprep.subr.mxu0 0.0
    %449 = vmatpush1.msra.mxu0 0.0
    %450 = vmatprep.subr.mxu0 0.0
    %451 = vmatpush1.msra.mxu0 0.0
    %452 = vmatprep.subr.mxu0 0.0
    %453 = vmatpush1.msra.mxu0 0.0
    %454 = vmatprep.subr.mxu0 0.0
    %455 = vmatpush1.msra.mxu0 0.0
    %456 = vmatprep.mubr.f32.mxu0 0.0
    %457 = vmatmul.mubr.f32.gmra.mrb[0].mxu0 %v387
    %v458 = vpop.f32.mrb[0].mxu0
    %v459 = vadd.f32 0.0, %v458
    %v460 = vpop.f32.mrb[0].mxu0
    %461 = vmatprep.mubr.f32.mxu0 0.0
    %462 = vmatmul.mubr.f32.gmra.mrb[0].mxu0 %v390
    %v463 = vpop.f32.mrb[0].mxu0
    %v464 = vadd.f32 0.0, %v463
    %v465 = vpop.f32.mrb[0].mxu0
    %466 = vdwg.mxu0
    %467 = vadd.xlane.f32.xlu0 %v459
    %v468 = vpop.xlane.xlu0 %467
    %469 = vadd.xlane.f32.xlu0 %v464
    %v470 = vpop.xlane.xlu0 %469
    %v471 = vmul.f32 %v468, %v118
    %v472 = vmul.f32 %v470, %v118
    %v473 = vmul.f32 %v459, %v459
    %v474 = vmul.f32 %v464, %v464
    %475 = vadd.xlane.f32.xlu0 %v473
    %v476 = vpop.xlane.xlu0 %475
    %477 = vadd.xlane.f32.xlu0 %v474
    %v478 = vpop.xlane.xlu0 %477
    %v479 = vmul.f32 %v476, %v118
    %v480 = vmul.f32 %v478, %v118
    %v481 = vmul.f32 %v471, %v471
    %v482 = vmul.f32 %v472, %v472
    %v483 = vsub.f32 %v479, %v481
    %v484 = vsub.f32 %v480, %v482
    %v485 = vmax.f32 %v483, 0.0
    %v486 = vmax.f32 %v484, 0.0
    %v487 = vadd.f32 %v485, 1e-05
    %v488 = vadd.f32 %v486, 1e-05
    %v489 = vrsqrt.pop %v487
    %v490 = vrsqrt.pop %v488
    %v491 = vsub.f32 0.0, %v471
    %v492 = vsub.f32 0.0, %v472
    %v493 = vmul.f32 %v491, %v489
    %v494 = vmul.f32 %v492, %v490
    %v495 = vmul.f32 %v459, %v489
    %v496 = vmul.f32 %v464, %v490
    %v497 = vadd.f32 %v495, %v493
    %v498 = vadd.f32 %v496, %v494
    %v499 = vmul.f32 %v497, 0.01
    %v500 = vmul.f32 %v498, 0.01
    %v501 = vmax.f32 %v497, %v499
    %v502 = vmax.f32 %v498, %v500
    %v503 = vld [vmem:[%s1 + $0x40] sm:$0xff]
    %v504 = vld [vmem:[%s1 + $0x48] sm:$0xff]
    %v505 = vld [vmem:[%s1 + $0x50] sm:$0xff]
    %v507 = vsel %vm288, %v503, 0
    %v510 = vsel %vm288, %v504, 0
    %v513 = vsel %vm288, %v505, 0
    %515 = vmatprep.subr.mxu0 0.0
    %516 = vmatpush1.msra.mxu0 %v501
    %517 = vmatprep.subr.mxu0 0.0
    %518 = vmatpush1.msra.mxu0 %v502
    %519 = vmatprep.subr.mxu0 0.0
    %520 = vmatpush1.msra.mxu0 0.0
    %521 = vmatprep.subr.mxu0 0.0
    %522 = vmatpush1.msra.mxu0 0.0
    %523 = vmatprep.subr.mxu0 0.0
    %524 = vmatpush1.msra.mxu0 0.0
    %525 = vmatprep.subr.mxu0 0.0
    %526 = vmatpush1.msra.mxu0 0.0
    %527 = vmatprep.subr.mxu0 0.0
    %528 = vmatpush1.msra.mxu0 0.0
    %529 = vmatprep.subr.mxu0 0.0
    %530 = vmatpush1.msra.mxu0 0.0
    %531 = vmatprep.subr.mxu0 0.0
    %532 = vmatpush1.msra.mxu0 0.0
    %533 = vmatprep.subr.mxu0 0.0
    %534 = vmatpush1.msra.mxu0 0.0
    %535 = vmatprep.subr.mxu0 0.0
    %536 = vmatpush1.msra.mxu0 0.0
    %537 = vmatprep.subr.mxu0 0.0
    %538 = vmatpush1.msra.mxu0 0.0
    %539 = vmatprep.subr.mxu0 0.0
    %540 = vmatpush1.msra.mxu0 0.0
    %541 = vmatprep.subr.mxu0 0.0
    %542 = vmatpush1.msra.mxu0 0.0
    %543 = vmatprep.subr.mxu0 0.0
    %544 = vmatpush1.msra.mxu0 0.0
    %545 = vmatprep.subr.mxu0 0.0
    %546 = vmatpush1.msra.mxu0 0.0
    %547 = vmatprep.subr.mxu0 0.0
    %548 = vmatpush1.msra.mxu0 0.0
    %549 = vmatprep.subr.mxu0 0.0
    %550 = vmatpush1.msra.mxu0 0.0
    %551 = vmatprep.subr.mxu0 0.0
    %552 = vmatpush1.msra.mxu0 0.0
    %553 = vmatprep.subr.mxu0 0.0
    %554 = vmatpush1.msra.mxu0 0.0
    %555 = vmatprep.subr.mxu0 0.0
    %556 = vmatpush1.msra.mxu0 0.0
    %557 = vmatprep.subr.mxu0 0.0
    %558 = vmatpush1.msra.mxu0 0.0
    %559 = vmatprep.subr.mxu0 0.0
    %560 = vmatpush1.msra.mxu0 0.0
    %561 = vmatprep.subr.mxu0 0.0
    %562 = vmatpush1.msra.mxu0 0.0
    %563 = vmatprep.subr.mxu0 0.0
    %564 = vmatpush1.msra.mxu0 0.0
    %565 = vmatprep.subr.mxu0 0.0
    %566 = vmatpush1.msra.mxu0 0.0
    %567 = vmatprep.subr.mxu0 0.0
    %568 = vmatpush1.msra.mxu0 0.0
    %569 = vmatprep.subr.mxu0 0.0
    %570 = vmatpush1.msra.mxu0 0.0
    %571 = vmatprep.subr.mxu0 0.0
    %572 = vmatpush1.msra.mxu0 0.0
    %573 = vmatprep.subr.mxu0 0.0
    %574 = vmatpush1.msra.mxu0 0.0
    %575 = vmatprep.subr.mxu0 0.0
    %576 = vmatpush1.msra.mxu0 0.0
    %577 = vmatprep.subr.mxu0 0.0
    %578 = vmatpush1.msra.mxu0 0.0
    %579 = vmatprep.mubr.f32.mxu0 0.0
    %580 = vmatmul.mubr.f32.gmra.mrb[0].mxu0 %v507
    %v581 = vpop.f32.mrb[0].mxu0
    %v582 = vadd.f32 0.0, %v581
    %v583 = vpop.f32.mrb[0].mxu0
    %584 = vmatprep.mubr.f32.mxu0 0.0
    %585 = vmatmul.mubr.f32.gmra.mrb[0].mxu0 %v510
    %v586 = vpop.f32.mrb[0].mxu0
    %v587 = vadd.f32 0.0, %v586
    %v588 = vpop.f32.mrb[0].mxu0
    %589 = vmatprep.mubr.f32.mxu0 0.0
    %590 = vmatmul.mubr.f32.gmra.mrb[0].mxu0 %v513
    %v591 = vpop.f32.mrb[0].mxu0
    %v592 = vadd.f32 0.0, %v591
    %v593 = vpop.f32.mrb[0].mxu0
    %594 = vdwg.mxu0
    %595 = vadd.xlane.f32.xlu0 %v582
    %v596 = vpop.xlane.xlu0 %595
    %597 = vadd.xlane.f32.xlu0 %v587
    %v598 = vpop.xlane.xlu0 %597
    %599 = vadd.xlane.f32.xlu0 %v592
    %v600 = vpop.xlane.xlu0 %599
    %v601 = vmul.f32 %v596, %v118
    %v602 = vmul.f32 %v598, %v118
    %v603 = vmul.f32 %v600, %v118
    %v604 = vmul.f32 %v582, %v582
    %v605 = vmul.f32 %v587, %v587
    %v606 = vmul.f32 %v592, %v592
    %607 = vadd.xlane.f32.xlu0 %v604
    %v608 = vpop.xlane.xlu0 %607
    %609 = vadd.xlane.f32.xlu0 %v605
    %v610 = vpop.xlane.xlu0 %609
    %611 = vadd.xlane.f32.xlu0 %v606
    %v612 = vpop.xlane.xlu0 %611
    %v613 = vmul.f32 %v608, %v118
    %v614 = vmul.f32 %v610, %v118
    %v615 = vmul.f32 %v612, %v118
    %v616 = vmul.f32 %v601, %v601
    %v617 = vmul.f32 %v602, %v602
    %v618 = vmul.f32 %v603, %v603
    %v619 = vsub.f32 %v613, %v616
    %v620 = vsub.f32 %v614, %v617
    %v621 = vsub.f32 %v615, %v618
    %v622 = vmax.f32 %v619, 0.0
    %v623 = vmax.f32 %v620, 0.0
    %v624 = vmax.f32 %v621, 0.0
    %v625 = vadd.f32 %v622, 1e-05
    %v626 = vadd.f32 %v623, 1e-05
    %v627 = vadd.f32 %v624, 1e-05
    %v628 = vrsqrt.pop %v625
    %v629 = vrsqrt.pop %v626
    %v630 = vrsqrt.pop %v627
    %v631 = vsub.f32 0.0, %v601
    %v632 = vsub.f32 0.0, %v602
    %v633 = vsub.f32 0.0, %v603
    %v634 = vmul.f32 %v631, %v628
    %v635 = vmul.f32 %v632, %v629
    %v636 = vmul.f32 %v633, %v630
    %v637 = vmul.f32 %v582, %v628
    %v638 = vmul.f32 %v587, %v629
    %v639 = vmul.f32 %v592, %v630
    %v640 = vadd.f32 %v637, %v634
    %v641 = vadd.f32 %v638, %v635
    %v642 = vadd.f32 %v639, %v636
    %v643 = vmul.f32 %v640, 0.01
    %v644 = vmul.f32 %v641, 0.01
    %v645 = vmul.f32 %v642, 0.01
    %v646 = vmax.f32 %v640, %v643
    %v647 = vmax.f32 %v641, %v644
    %v648 = vmax.f32 %v642, %v645
    %v649 = vld [vmem:[%s1 + $0x78] sm:$0xff]
    %v650 = vld [vmem:[%s1 + $0x80] sm:$0xff]
    %v651 = vld [vmem:[%s1 + $0x88] sm:$0xff]
    %v652 = vld [vmem:[%s1 + $0x90] sm:$0xff]
    %v653 = vld [vmem:[%s1 + $0x58] sm:$0xff]
    %v654 = vld [vmem:[%s1 + $0x60] sm:$0xff]
    %v655 = vld [vmem:[%s1 + $0x68] sm:$0xff]
    %v656 = vld [vmem:[%s1 + $0x70] sm:$0xff]
    %658 = vset.pattern.permute.xlu0 0
    %659 = vperm.xlu0 %658, %v649
    %v660 = vpop.permute.xlu0 %659
    %663 = vset.pattern.permute.xlu0 0
    %664 = vperm.xlu0 %663, %v650
    %v665 = vpop.permute.xlu0 %664
    %668 = vset.pattern.permute.xlu0 0
    %669 = vperm.xlu0 %668, %v651
    %v670 = vpop.permute.xlu0 %669
    %673 = vset.pattern.permute.xlu0 0
    %674 = vperm.xlu0 %673, %v652
    %v675 = vpop.permute.xlu0 %674
    %v678 = vsel %vm169, %v653, 0
    %v681 = vsel %vm169, %v654, 0
    %v684 = vsel %vm169, %v655, 0
    %v687 = vsel %vm169, %v656, 0
    %689 = vmatprep.subr.mxu0 0.0
    %690 = vmatpush1.msra.mxu0 %v646
    %691 = vmatprep.subr.mxu0 0.0
    %692 = vmatpush1.msra.mxu0 %v647
    %693 = vmatprep.subr.mxu0 0.0
    %694 = vmatpush1.msra.mxu0 %v648
    %695 = vmatprep.subr.mxu0 0.0
    %696 = vmatpush1.msra.mxu0 0.0
    %697 = vmatprep.subr.mxu0 0.0
    %698 = vmatpush1.msra.mxu0 0.0
    %699 = vmatprep.subr.mxu0 0.0
    %700 = vmatpush1.msra.mxu0 0.0
    %701 = vmatprep.subr.mxu0 0.0
    %702 = vmatpush1.msra.mxu0 0.0
    %703 = vmatprep.subr.mxu0 0.0
    %704 = vmatpush1.msra.mxu0 0.0
    %705 = vmatprep.subr.mxu0 0.0
    %706 = vmatpush1.msra.mxu0 0.0
    %707 = vmatprep.subr.mxu0 0.0
    %708 = vmatpush1.msra.mxu0 0.0
    %709 = vmatprep.subr.mxu0 0.0
    %710 = vmatpush1.msra.mxu0 0.0
    %711 = vmatprep.subr.mxu0 0.0
    %712 = vmatpush1.msra.mxu0 0.0
    %713 = vmatprep.subr.mxu0 0.0
    %714 = vmatpush1.msra.mxu0 0.0
    %715 = vmatprep.subr.mxu0 0.0
    %716 = vmatpush1.msra.mxu0 0.0
    %717 = vmatprep.subr.mxu0 0.0
    %718 = vmatpush1.msra.mxu0 0.0
    %719 = vmatprep.subr.mxu0 0.0
    %720 = vmatpush1.msra.mxu0 0.0
    %721 = vmatprep.subr.mxu0 0.0
    %722 = vmatpush1.msra.mxu0 0.0
    %723 = vmatprep.subr.mxu0 0.0
    %724 = vmatpush1.msra.mxu0 0.0
    %725 = vmatprep.subr.mxu0 0.0
    %726 = vmatpush1.msra.mxu0 0.0
    %727 = vmatprep.subr.mxu0 0.0
    %728 = vmatpush1.msra.mxu0 0.0
    %729 = vmatprep.subr.mxu0 0.0
    %730 = vmatpush1.msra.mxu0 0.0
    %731 = vmatprep.subr.mxu0 0.0
    %732 = vmatpush1.msra.mxu0 0.0
    %733 = vmatprep.subr.mxu0 0.0
    %734 = vmatpush1.msra.mxu0 0.0
    %735 = vmatprep.subr.mxu0 0.0
    %736 = vmatpush1.msra.mxu0 0.0
    %737 = vmatprep.subr.mxu0 0.0
    %738 = vmatpush1.msra.mxu0 0.0
    %739 = vmatprep.subr.mxu0 0.0
    %740 = vmatpush1.msra.mxu0 0.0
    %741 = vmatprep.subr.mxu0 0.0
    %742 = vmatpush1.msra.mxu0 0.0
    %743 = vmatprep.subr.mxu0 0.0
    %744 = vmatpush1.msra.mxu0 0.0
    %745 = vmatprep.subr.mxu0 0.0
    %746 = vmatpush1.msra.mxu0 0.0
    %747 = vmatprep.subr.mxu0 0.0
    %748 = vmatpush1.msra.mxu0 0.0
    %749 = vmatprep.subr.mxu0 0.0
    %750 = vmatpush1.msra.mxu0 0.0
    %751 = vmatprep.subr.mxu0 0.0
    %752 = vmatpush1.msra.mxu0 0.0
    %753 = vmatprep.mubr.f32.mxu0 0.0
    %754 = vmatmul.mubr.f32.gmra.mrb[0].mxu0 %v678
    %v755 = vpop.f32.mrb[0].mxu0
    %v756 = vadd.f32 %v660, %v755
    %v757 = vpop.f32.mrb[0].mxu0
    %758 = vmatprep.mubr.f32.mxu0 0.0
    %759 = vmatmul.mubr.f32.gmra.mrb[0].mxu0 %v681
    %v760 = vpop.f32.mrb[0].mxu0
    %v761 = vadd.f32 %v665, %v760
    %v762 = vpop.f32.mrb[0].mxu0
    %763 = vmatprep.mubr.f32.mxu0 0.0
    %764 = vmatmul.mubr.f32.gmra.mrb[0].mxu0 %v684
    %v765 = vpop.f32.mrb[0].mxu0
    %v766 = vadd.f32 %v670, %v765
    %v767 = vpop.f32.mrb[0].mxu0
    %768 = vmatprep.mubr.f32.mxu0 0.0
    %769 = vmatmul.mubr.f32.gmra.mrb[0].mxu0 %v687
    %v770 = vpop.f32.mrb[0].mxu0
    %v771 = vadd.f32 %v675, %v770
    %v772 = vpop.f32.mrb[0].mxu0
    %773 = vdwg.mxu0
    %v774 = vmul.f32 %v756, 0.5
    %v775 = vmul.f32 %v761, 0.5
    %v776 = vmul.f32 %v766, 0.5
    %v777 = vmul.f32 %v771, 0.5
    %v778 = vtanh.pop %v774
    %v779 = vtanh.pop %v775
    %v780 = vtanh.pop %v776
    %v781 = vtanh.pop %v777
    %v782 = vmul.f32 %v778, 0.5
    %v783 = vmul.f32 %v779, 0.5
    %v784 = vmul.f32 %v780, 0.5
    %v785 = vmul.f32 %v781, 0.5
    %v786 = vadd.f32 %v782, 0.5
    %v787 = vadd.f32 %v783, 0.5
    %v788 = vadd.f32 %v784, 0.5
    %v789 = vadd.f32 %v785, 0.5
    %790 = vst [vmem:[#allocation2] sm:$0xff] %v786
    %791 = vst [vmem:[#allocation2 + $0x8] sm:$0xff] %v787
    %792 = vst [vmem:[#allocation2 + $0x10] sm:$0xff] %v788
    %793 = vst [vmem:[#allocation2 + $0x18] sm:$0xff] %v789
    // Predicated region
    $region10: #{tpu_custom_call.1} parent=1 // pred_check
      _
    $region11: #{tpu_custom_call.1} parent=1 // pred_check_branch
      %795 = sbr.rel (0) target = $region13
    $region12: #{tpu_custom_call.1} parent=1 // pred_region
      %s797 = ssub.s32 512, 512
      %798 = vsyncadd [#allocation3], %s797
      %s799 = sshll.u32 [#allocation2], 4
      %s800 = int_to_ptr.vmem [resolvable:$true] %s799
      %805 = dma.vmem_to_hbm [thread:$0]  %s800, 512, %s2, [#allocation3], 128, 128, 8
    $region13: #{tpu_custom_call.1} parent=1 // pred_fallthru
      _
    // Predicated region
    $region14: #{tpu_custom_call.1} parent=1 // pred_check
      _
    $region15: #{tpu_custom_call.1} parent=1 // pred_check_branch
      %807 = sbr.rel (0) target = $region17
    $region16: #{tpu_custom_call.1} parent=1 // pred_region
      %s809 = ssub.s32 128, 128
      %810 = vsyncadd [#allocation5], %s809
      %s812 = sshll.u32 [#allocation4], 4
      %s813 = int_to_ptr.vmem [resolvable:$true] %s812
      %815 = dma.vmem_to_hbm [thread:$0]  %s813, 128, %s3, [#allocation5]
    $region17: #{tpu_custom_call.1} parent=1 // pred_fallthru
      _
    // Predicated region
    $region18: #{tpu_custom_call.1} parent=1 // pred_check
      _
    $region19: #{tpu_custom_call.1} parent=1 // pred_check_branch
      %817 = sbr.rel (0) target = $region21
    $region20: #{tpu_custom_call.1} parent=1 // pred_region
      %818 = dma.done [#allocation3], 512
    $region21: #{tpu_custom_call.1} parent=1 // pred_fallthru
      _
    // Predicated region
    $region22: #{tpu_custom_call.1} parent=1 // pred_check
      _
    $region23: #{tpu_custom_call.1} parent=1 // pred_check_branch
      %820 = sbr.rel (0) target = $region25
    $region24: #{tpu_custom_call.1} parent=1 // pred_region
      %821 = dma.done [#allocation5], 128
    $region25: #{tpu_custom_call.1} parent=1 // pred_fallthru
      _
    %822 = vsyncpa [#allocation3], 1
    %823 = vsyncpa [#allocation5], 1

</llo_original>
